<compile_context>
chip_gen: v7x
topology: tpu7x:2x2x1
jax: 0.10.0
libtpu: 0.0.40
codegen_flags: <defaults>
</compile_context>

<pallas_src>
from dataclasses import dataclass
from typing import List, Optional, Tuple

import jax
import jax.numpy as jnp
from jax.experimental import pallas as pl
from jax.experimental.pallas import tpu as pltpu

SUBLANE = 8
LANE = 128
VMEM_CAP = 64 * 1024 * 1024          # conservative budget: v7x physical VMEM/TC
WEIGHT_VMEM_BUDGET = VMEM_CAP // 3   # resident-weight budget per fused call


def _round_up(x: int, m: int) -> int:
    return ((x + m - 1) // m) * m


def _default_tile_n() -> int:
    # Review: 512 rows on v7x (64 MiB VMEM), 1024 on v5e/v6e (128 MiB).
    try:
        kind = jax.devices()[0].device_kind.lower()
    except Exception:
        kind = ""
    return 512 if "v7" in kind else 1024


# ----------------------------------------------------------------------------
# Kernel 1: BatchNorm batch statistics (shifted sums, masked boundary tiles).
# ----------------------------------------------------------------------------
def _make_bn_stats_kernel(tile_n: int, n: int):
    def kernel(off_ref, x_ref, s1_ref, s2_ref):
        i = pl.program_id(0)

        @pl.when(i == 0)
        def _init():
            s1_ref[...] = jnp.zeros_like(s1_ref)
            s2_ref[...] = jnp.zeros_like(s2_ref)

        x = x_ref[...].astype(jnp.float32)
        rows = jax.lax.broadcasted_iota(jnp.int32, x.shape, 0) + i * tile_n
        mask = rows < n                      # mask rows beyond the true batch
        d = jnp.where(mask, x - off_ref[...], 0.0)   # shifted -> stable variance
        s1_ref[...] += jnp.sum(d, axis=0, keepdims=True)
        s2_ref[...] += jnp.sum(d * d, axis=0, keepdims=True)

    return kernel


def bn_batch_stats(x: jnp.ndarray, *, tile_n: int):
    """Biased per-channel batch mean/var of x (n, c), computed with a
    per-channel shift (offset = row 0) to avoid E[x^2]-E[x]^2 cancellation."""
    n, c = x.shape
    tile = n if n <= tile_n else tile_n
    grid = (pl.cdiv(n, tile),)
    offset = x[0:1, :].astype(jnp.float32)

    est = 2 * tile * c * x.dtype.itemsize + 8 * c * 4 + (1 << 20)
    vmem_limit = int(min(max(est, 16 << 20), int(VMEM_CAP * 0.95)))

    s1, s2 = pl.pallas_call(
        _make_bn_stats_kernel(tile, n),
        out_shape=(jax.ShapeDtypeStruct((1, c), jnp.float32),
                   jax.ShapeDtypeStruct((1, c), jnp.float32)),
        grid=grid,
        in_specs=[pl.BlockSpec((1, c), lambda i: (0, 0),
                               pipeline_mode=pl.Buffered(1)),
                  pl.BlockSpec((tile, c), lambda i: (i, 0))],
        out_specs=(pl.BlockSpec((1, c), lambda i: (0, 0)),
                   pl.BlockSpec((1, c), lambda i: (0, 0))),
        compiler_params=pltpu.CompilerParams(
            dimension_semantics=("arbitrary",),       # reduction axis
            vmem_limit_bytes=vmem_limit),
        cost_estimate=pl.CostEstimate(
            flops=4 * n * c, transcendentals=0,
            bytes_accessed=x.size * x.dtype.itemsize + 3 * c * 4),
    )(offset, x)
    # TODO(synk): on v7x the single "arbitrary" axis runs this reduction on
    # one TensorCore; a (2, inner) grid with per-core partial sums would ~2x it.
    mean = offset + s1 / n
    var = jnp.maximum(s2 / n - (s1 / n) ** 2, 0.0)
    return mean, var


# ----------------------------------------------------------------------------
# Kernel 2: fused [BN affine] -> (Linear -> ReLU?) x L (+ optional fused concat
# with batch.x), one row tile per grid step.
# ----------------------------------------------------------------------------
def _make_fused_kernel(num_layers: int, relu_flags: Tuple[bool, ...],
                       has_bn: bool, xcat_width: int, mxu_dtype):
    def kernel(*refs):
        pos = 0
        if has_bn:
            scale_ref, shift_ref = refs[0], refs[1]
            pos = 2
        if xcat_width:
            xcat_ref = refs[pos]
            pos += 1
        x_ref = refs[pos]
        layer_refs = refs[pos + 1: pos + 1 + 2 * num_layers]
        o_ref = refs[pos + 1 + 2 * num_layers]

        h = x_ref[...]
        if has_bn:
            # Folded BatchNorm: h = x*(gamma*rsqrt(var+eps)) + (beta - mean*scale)
            h = h.astype(jnp.float32) * scale_ref[...] + shift_ref[...]
        h = h.astype(mxu_dtype)                       # bf16 MXU operand

        for li in range(num_layers):
            w_ref = layer_refs[2 * li]                # bf16 (cin, cout), resident
            b_ref = layer_refs[2 * li + 1]            # f32  (1, cout),  resident
            y = jnp.dot(h, w_ref[...], preferred_element_type=jnp.float32)
            y = y + b_ref[...]
            if relu_flags[li]:
                y = jnp.maximum(y, 0.0)
            # Carry inter-layer activations as bf16 (next layer casts anyway).
            h = y.astype(mxu_dtype) if li + 1 < num_layers else y

        if xcat_width:
            # Fused torch.cat((batch.x, out), 1): batch.x width is a 128
            # multiple (checked by caller), so both stores start lane-aligned.
            o_ref[:, :xcat_width] = xcat_ref[...].astype(o_ref.dtype)
            o_ref[:, xcat_width:] = h.astype(o_ref.dtype)
        else:
            o_ref[...] = h.astype(o_ref.dtype)

    return kernel


def fused_encoder_forward(x, layers, *, scale=None, shift=None, xcat=None,
                          tile_n: int, out_dtype=jnp.float32,
                          mxu_dtype=jnp.bfloat16):
    """x: (n, cin) activations (cast to bf16 in-kernel).
    layers: list of (w bf16 (cin, cout), b f32 (1, cout), relu: bool).
    xcat: optional (n, d) array (d a multiple of 128) concatenated on the left."""
    n, cin = x.shape
    enc_out = layers[-1][0].shape[1]
    xcat_w = 0 if xcat is None else xcat.shape[1]
    if xcat is not None:
        assert xcat_w % LANE == 0, "fused concat requires 128-multiple width"
    out_w = xcat_w + enc_out
    has_bn = scale is not None
    relu_flags = tuple(bool(r) for (_, _, r) in layers)
    out_isz = jnp.dtype(out_dtype).itemsize

    weight_bytes = sum(w.size * w.dtype.itemsize + b.size * b.dtype.itemsize
                       for (w, b, _) in layers)
    bn_bytes = (scale.size + shift.size) * 4 if has_bn else 0
    widths = [cin] + [w.shape[1] for (w, _, _) in layers]

    def est_vmem(t):
        act = 2 * t * cin * x.dtype.itemsize           # double-buffered input
        act += 2 * t * out_w * out_isz                  # double-buffered output
        if xcat is not None:
            act += 2 * t * xcat_w * xcat.dtype.itemsize
        inter = t * max(widths) * (4 + 2) * 2           # live f32+bf16 intermediates
        return weight_bytes + bn_bytes + act + inter

    # Shrink the row tile until resident weights + pipelined tiles fit the
    # smallest VMEM (v7x 64 MiB) with headroom.
    t = max(SUBLANE, _round_up(tile_n, SUBLANE))
    while t > SUBLANE and est_vmem(t) > VMEM_CAP - (8 << 20):
        t = max(SUBLANE, t // 2)
    tile = n if n <= t else t
    grid = (pl.cdiv(n, tile),)

    resident = dict(pipeline_mode=pl.Buffered(1))       # don't double-buffer constants
    in_specs, args = [], []
    if has_bn:
        in_specs += [pl.BlockSpec((1, cin), lambda i: (0, 0), **resident),
                     pl.BlockSpec((1, cin), lambda i: (0, 0), **resident)]
        args += [scale.astype(jnp.float32), shift.astype(jnp.float32)]
    if xcat is not None:
        in_specs.append(pl.BlockSpec((tile, xcat_w), lambda i: (i, 0)))
        args.append(xcat)
    # Row-tiled activation input: pipelined / double-buffered over the grid.
    in_specs.append(pl.BlockSpec((tile, cin), lambda i: (i, 0)))
    args.append(x)
    # Weights & biases: full extent + constant index_map -> resident in VMEM.
    for (w, b, _) in layers:
        in_specs.append(pl.BlockSpec(w.shape, lambda i: (0, 0), **resident))
        in_specs.append(pl.BlockSpec(b.shape, lambda i: (0, 0), **resident))
        args += [w, b]

    flops = 2 * n * sum(w.shape[0] * w.shape[1] for (w, _, _) in layers)
    bytes_accessed = (x.size * x.dtype.itemsize + weight_bytes + bn_bytes
                      + n * out_w * out_isz
                      + (xcat.size * xcat.dtype.itemsize if xcat is not None else 0))
    vmem_limit = int(min(max(est_vmem(tile) + (4 << 20), 32 << 20),
                         int(VMEM_CAP * 0.95)))

    kernel = _make_fused_kernel(len(layers), relu_flags, has_bn, xcat_w, mxu_dtype)
    return pl.pallas_call(
        kernel,
        out_shape=jax.ShapeDtypeStruct((n, out_w), out_dtype),
        grid=grid,
        in_specs=in_specs,
        out_specs=pl.BlockSpec((tile, out_w), lambda i: (i, 0)),
        compiler_params=pltpu.CompilerParams(
            dimension_semantics=("parallel",),          # rows shard across TCs (v7x)
            vmem_limit_bytes=vmem_limit),
        cost_estimate=pl.CostEstimate(flops=flops, transcendentals=0,
                                      bytes_accessed=bytes_accessed),
    )(*args)


# ----------------------------------------------------------------------------
# LinearEncoder module (parameter setup + thin JAX glue)
# ----------------------------------------------------------------------------
@dataclass
class Batch:
    x: jnp.ndarray
    pos: Optional[jnp.ndarray] = None


def _init_linear(key, cin, cout):
    # PyTorch nn.Linear default init: U(-1/sqrt(cin), 1/sqrt(cin))
    kw, kb = jax.random.split(key)
    bound = 1.0 / (cin ** 0.5)
    w = jax.random.uniform(kw, (cin, cout), jnp.float32, -bound, bound)
    b = jax.random.uniform(kb, (cout,), jnp.float32, -bound, bound)
    return w, b


def _split_layers_by_budget(layers, budget):
    """v7x fallback: chunk the layer stack so each fused call keeps at most
    `budget` bytes of weights resident in VMEM."""
    chunks, cur, cur_bytes = [], [], 0
    for (w, b, r) in layers:
        lb = w.size * w.dtype.itemsize + b.size * b.dtype.itemsize
        if cur and cur_bytes + lb > budget:
            chunks.append(cur)
            cur, cur_bytes = [], 0
        cur.append((w, b, r))
        cur_bytes += lb
    chunks.append(cur)
    return chunks


class LinearEncoder:
    def __init__(self, in_channel, hidden_channel, var_name,
                 model_type='linear', num_layers=None, norm_type=None,
                 key=jax.random.PRNGKey(0), tile_n=None):
        self.var_name = var_name
        self.norm_type = norm_type
        self.model_type = model_type
        self.in_channel = in_channel
        self.hidden_channel = hidden_channel
        self.eps = 1e-5
        pref = _default_tile_n() if tile_n is None else tile_n
        self.tile_n = max(SUBLANE, _round_up(pref, SUBLANE))

        # f32 master parameters (also used by the pure-JAX reference).
        self.layers_f32: List[Tuple[jnp.ndarray, jnp.ndarray, bool]] = []
        if model_type == 'mlp':
            assert num_layers is not None and num_layers >= 1
            keys = jax.random.split(key, max(num_layers, 2))
            if num_layers == 1:
                w, b = _init_linear(keys[0], in_channel, hidden_channel)
                self.layers_f32.append((w, b, True))
            else:
                w, b = _init_linear(keys[0], in_channel, 2 * hidden_channel)
                self.layers_f32.append((w, b, True))
                for i in range(num_layers - 2):
                    w, b = _init_linear(keys[1 + i],
                                        2 * hidden_channel, 2 * hidden_channel)
                    self.layers_f32.append((w, b, True))
                w, b = _init_linear(keys[num_layers - 1],
                                    2 * hidden_channel, hidden_channel)
                self.layers_f32.append((w, b, True))
        elif model_type == 'linear':
            w, b = _init_linear(key, in_channel, hidden_channel)
            self.layers_f32.append((w, b, False))
        else:
            raise ValueError(f"unknown model_type {model_type}")

        # Device-side params: bf16 weights (MXU operands), f32 row-biases.
        # No lane padding needed: full-extent blocks bypass the (8,128) rule
        # and the kernel output is written at its true width.
        layers_dev = [(w.astype(jnp.bfloat16),
                       b.reshape(1, -1).astype(jnp.float32), r)
                      for (w, b, r) in self.layers_f32]
        self.layer_chunks = _split_layers_by_budget(layers_dev, WEIGHT_VMEM_BUDGET)

        if norm_type == 'batchnorm':
            self.bn_gamma = jnp.ones((in_channel,), jnp.float32)
            self.bn_beta = jnp.zeros((in_channel,), jnp.float32)
        else:
            self.bn_gamma = self.bn_beta = None

    def __call__(self, batch: Batch) -> Batch:
        var = getattr(batch, self.var_name)
        n, cin = var.shape
        assert cin == self.in_channel

        scale = shift = None
        if self.norm_type == 'batchnorm':
            # TODO(synk): training-mode batch statistics only; PyTorch
            # running_mean/running_var (eval mode) are not tracked.
            mean, bvar = bn_batch_stats(var, tile_n=self.tile_n)
            inv_std = jax.lax.rsqrt(bvar + self.eps)
            scale = self.bn_gamma[None, :] * inv_std
            shift = self.bn_beta[None, :] - mean * scale

        concat_x = None
        fuse_concat = False
        if self.var_name != 'x':
            fuse_concat = (batch.x.shape[1] % LANE == 0)
            if fuse_concat:
                concat_x = batch.x

        h = var
        nchunks = len(self.layer_chunks)
        for ci, chunk in enumerate(self.layer_chunks):
            last = (ci == nchunks - 1)
            h = fused_encoder_forward(
                h, chunk,
                scale=scale if ci == 0 else None,
                shift=shift if ci == 0 else None,
                xcat=concat_x if (last and fuse_concat) else None,
                tile_n=self.tile_n,
                out_dtype=jnp.float32 if last else jnp.bfloat16)

        if self.var_name == 'x':
            batch.x = h
        elif fuse_concat:
            batch.x = h           # kernel already wrote [batch.x | encoded]
        else:
            # TODO(synk): batch.x width not a 128 multiple -> concat stays in
            # JAX so the kernel's stores remain lane-aligned.
            batch.x = jnp.concatenate((batch.x, h), axis=1)
        return batch


# ----------------------------------------------------------------------------
# Pure-JAX reference (mirrors the kernel's bf16 matmul operands)
# ----------------------------------------------------------------------------
def reference_forward(enc: LinearEncoder, var_in: jnp.ndarray) -> jnp.ndarray:
    bf16 = jnp.bfloat16
    var = var_in.astype(jnp.float32)
    if enc.norm_type == 'batchnorm':
        mean = jnp.mean(var, axis=0, keepdims=True)
        v = jnp.mean((var - mean) ** 2, axis=0, keepdims=True)
        var = (var - mean) * jax.lax.rsqrt(v + enc.eps)
        var = var * enc.bn_gamma + enc.bn_beta
    for (w, b, relu) in enc.layers_f32:
        a = var.astype(bf16).astype(jnp.float32)
        wq = w.astype(bf16).astype(jnp.float32)
        var = a @ wq + b
        if relu:
            var = jnp.maximum(var, 0.0)
    return var


# ----------------------------------------------------------------------------
if __name__ == "__main__":
    key = jax.random.PRNGKey(0)
    k_x, k_pos, k_x2, k_x3, k_pos3, k_e1, k_e2, k_e3 = jax.random.split(key, 8)

    IN_CH, HID = 16, 32

    # Case 1: 'linear' encoder on var_name='pos'.  batch.x width 128 is a lane
    # multiple, so torch.cat((batch.x, out), 1) is fused into the kernel store.
    N1, XW1 = 32, 128
    x0 = jax.random.normal(k_x, (N1, XW1), jnp.float32)
    pos = jax.random.normal(k_pos, (N1, IN_CH), jnp.float32)
    enc1 = LinearEncoder(IN_CH, HID, var_name='pos', model_type='linear', key=k_e1)
    out1 = jax.block_until_ready(enc1(Batch(x=x0, pos=pos)).x)
    ref1 = jnp.concatenate((x0, reference_forward(enc1, pos)), axis=1)
    assert out1.shape == (N1, XW1 + HID)
    assert jnp.allclose(out1, ref1, atol=1e-4, rtol=1e-4), \
        f"case1 max err {float(jnp.max(jnp.abs(out1 - ref1)))}"

    # Case 2: 3-layer 'mlp' + batchnorm on var_name='x'.  N=37 with a 16-row
    # tile exercises the masked boundary block and multi-step grids for both
    # the BN-stats reduction and the fused forward; the +5 mean exercises the
    # shifted-variance formulation.
    N2 = 37
    x_in = jax.random.normal(k_x2, (N2, IN_CH), jnp.float32) * 3.0 + 5.0
    enc2 = LinearEncoder(IN_CH, HID, var_name='x', model_type='mlp',
                         num_layers=3, norm_type='batchnorm', key=k_e2, tile_n=16)
    out2 = jax.block_until_ready(enc2(Batch(x=x_in)).x)
    ref2 = reference_forward(enc2, x_in)
    assert out2.shape == (N2, HID)
    assert jnp.allclose(out2, ref2, atol=2e-2, rtol=2e-2), \
        f"case2 max err {float(jnp.max(jnp.abs(out2 - ref2)))}"

    # Case 3: concat path where batch.x width (24) is NOT a lane multiple ->
    # kernel writes (n, hidden) directly; concat falls back to JAX.
    N3, XW3 = 19, 24
    x3 = jax.random.normal(k_x3, (N3, XW3), jnp.float32)
    pos3 = jax.random.normal(k_pos3, (N3, IN_CH), jnp.float32)
    enc3 = LinearEncoder(IN_CH, HID, var_name='pos', model_type='mlp',
                         num_layers=1, key=k_e3)
    out3 = jax.block_until_ready(enc3(Batch(x=x3, pos=pos3)).x)
    ref3 = jnp.concatenate((x3, reference_forward(enc3, pos3)), axis=1)
    assert out3.shape == (N3, XW3 + HID)
    assert jnp.allclose(out3, ref3, atol=1e-4, rtol=1e-4), \
        f"case3 max err {float(jnp.max(jnp.abs(out3 - ref3)))}"

    print("KERNEL_OK")
</pallas_src>

<mosaic_0001>
module attributes {stable_mosaic.version = 11 : i64} {
  func.func @kernel(%arg0: i32, %arg1: memref<32x128xf32, #tpu.memory_space<vmem>>, %arg2: memref<32x16xf32, #tpu.memory_space<vmem>>, %arg3: memref<16x32xbf16, #tpu.memory_space<vmem>>, %arg4: memref<1x32xf32, #tpu.memory_space<vmem>>, %arg5: memref<32x160xf32, #tpu.memory_space<vmem>>) attributes {dimension_semantics = [#tpu.dimension_semantics<parallel>], iteration_bounds = array<i64: 1>, scalar_prefetch = 0 : i64, scratch_operands = 0 : i64, tpu.core_type = #tpu.core_type<tc>, window_params = [{transform_indices = @transform_0, window_bounds = array<i64: 32, 128>}, {transform_indices = @transform_1, window_bounds = array<i64: 32, 16>}, {pipeline_mode = #tpu.pipeline_mode<synchronous>, transform_indices = @transform_2, window_bounds = array<i64: 16, 32>}, {pipeline_mode = #tpu.pipeline_mode<synchronous>, transform_indices = @transform_3, window_bounds = array<i64: 1, 32>}, {transform_indices = @transform_4, window_bounds = array<i64: 32, 160>}]} {
    %c0 = arith.constant 0 : index
    %c0_0 = arith.constant 0 : index
    %0 = vector.load %arg2[%c0, %c0_0] : memref<32x16xf32, #tpu.memory_space<vmem>>, vector<32x16xf32>
    %1 = arith.truncf %0 : vector<32x16xf32> to vector<32x16xbf16>
    %c0_1 = arith.constant 0 : index
    %c0_2 = arith.constant 0 : index
    %2 = vector.load %arg3[%c0_1, %c0_2] : memref<16x32xbf16, #tpu.memory_space<vmem>>, vector<16x32xbf16>
    %cst = arith.constant dense<0.000000e+00> : vector<32x32xf32>
    %3 = tpu.matmul %1, %2, %cst {dimension_numbers = #tpu.dot_dimension_numbers<[1], [0], [0], [1], [0, 0, 1, 1], [], []>} : vector<32x16xbf16>, vector<16x32xbf16>, vector<32x32xf32> -> vector<32x32xf32>
    %c0_3 = arith.constant 0 : index
    %c0_4 = arith.constant 0 : index
    %4 = vector.load %arg4[%c0_3, %c0_4] : memref<1x32xf32, #tpu.memory_space<vmem>>, vector<1x32xf32>
    %5 = vector.broadcast %4 : vector<1x32xf32> to vector<32x32xf32>
    %6 = arith.addf %3, %5 : vector<32x32xf32>
    %c0_5 = arith.constant 0 : index
    %c0_6 = arith.constant 0 : index
    %7 = vector.load %arg1[%c0_5, %c0_6] : memref<32x128xf32, #tpu.memory_space<vmem>>, vector<32x128xf32>
    %c0_7 = arith.constant 0 : index
    %c0_8 = arith.constant 0 : index
    %8 = vector.load %arg5[%c0_7, %c0_8] : memref<32x160xf32, #tpu.memory_space<vmem>>, vector<32x128xf32>
    tpu.vector_store %arg5[%c0_7, %c0_8], %7 {strides = array<i32>} : memref<32x160xf32, #tpu.memory_space<vmem>>, vector<32x128xf32>,
    %c0_9 = arith.constant 0 : index
    %c128 = arith.constant 128 : index
    %9 = vector.load %arg5[%c0_9, %c128] : memref<32x160xf32, #tpu.memory_space<vmem>>, vector<32x32xf32>
    tpu.vector_store %arg5[%c0_9, %c128], %6 {strides = array<i32>} : memref<32x160xf32, #tpu.memory_space<vmem>>, vector<32x32xf32>,
    return
  }
  func.func @transform_0(%arg0: i32) -> (i32, i32) {
    %c0_i32 = arith.constant 0 : i32
    %c0_i32_0 = arith.constant 0 : i32
    return %arg0, %c0_i32 : i32, i32
  }
  func.func @transform_1(%arg0: i32) -> (i32, i32) {
    %c0_i32 = arith.constant 0 : i32
    %c0_i32_0 = arith.constant 0 : i32
    return %arg0, %c0_i32 : i32, i32
  }
  func.func @transform_2(%arg0: i32) -> (i32, i32) {
    %c0_i32 = arith.constant 0 : i32
    %c0_i32_0 = arith.constant 0 : i32
    %c0_i32_1 = arith.constant 0 : i32
    return %c0_i32, %c0_i32_0 : i32, i32
  }
  func.func @transform_3(%arg0: i32) -> (i32, i32) {
    %c0_i32 = arith.constant 0 : i32
    %c0_i32_0 = arith.constant 0 : i32
    %c0_i32_1 = arith.constant 0 : i32
    return %c0_i32, %c0_i32_0 : i32, i32
  }
  func.func @transform_4(%arg0: i32) -> (i32, i32) {
    %c0_i32 = arith.constant 0 : i32
    %c0_i32_0 = arith.constant 0 : i32
    return %arg0, %c0_i32 : i32, i32
  }
}

</mosaic_0001>

<llo_original>
// kernel: tpu_custom_call.1
$region0: #{tpu_custom_call.1}
  #allocation0 [shape = 'u32[]', space=smem, size = 0x4, offset = 0x4, fixed_abs, tag = 'smem constant byte address 0x4 - core index']
  #allocation1 [shape = 'u32[144,128]{1,0:T(1,128)}', space=vmem, size = 0x12000, scoped, tag = 'internal scratch']
  %s0 = inlined_call_operand.vmem [shape: f32[32,128], index: 0, kind: input, shape index: {}]
  %s1 = inlined_call_operand.vmem [shape: f32[32,16], index: 1, kind: input, shape index: {}]
  %s2 = inlined_call_operand.vmem [shape: bf16[16,32], index: 2, kind: input, shape index: {}]
  %s3 = inlined_call_operand.vmem [shape: f32[1,32], index: 3, kind: input, shape index: {}]
  %s4 = inlined_call_operand.hbm [shape: f32[32,160], index: 4, kind: output, shape index: {}]
  %s5 = sld [smem:[#allocation0]]
  $region26: #{tpu_custom_call.1} parent=0
    _
  %s7 = ssub.s32 1, %s5
  %s8 = scalar_select 0, %s7, %s5
  $region1: #{tpu_custom_call.1} parent=0
    #allocation2 [shape = 'u8[32768]{0}', space=vmem, size = 0x8000, scoped, tag = 'output window, operand 0, single buffered']
    #allocation3 [shape = 's32[1]{0}', space=sflag, size = 0x4, scoped, tag = 'scoped memory for tpu_custom_call.1']
    %9 = vsyncpa [#allocation3], 0
    // Predicated region
    $region2: #{tpu_custom_call.1} parent=1 // pred_check
      _
    $region3: #{tpu_custom_call.1} parent=1 // pred_check_branch
      %11 = sbr.rel (0) target = $region5
    $region4: #{tpu_custom_call.1} parent=1 // pred_region
      _
    $region5: #{tpu_custom_call.1} parent=1 // pred_fallthru
      _
    // Predicated region
    $region6: #{tpu_custom_call.1} parent=1 // pred_check
      _
    $region7: #{tpu_custom_call.1} parent=1 // pred_check_branch
      %13 = sbr.rel (0) target = $region9
    $region8: #{tpu_custom_call.1} parent=1 // pred_region
      _
    $region9: #{tpu_custom_call.1} parent=1 // pred_fallthru
      _
    // Predicated region
    $region10: #{tpu_custom_call.1} parent=1 // pred_check
      _
    $region11: #{tpu_custom_call.1} parent=1 // pred_check_branch
      %15 = sbr.rel (0) target = $region13
    $region12: #{tpu_custom_call.1} parent=1 // pred_region
      _
    $region13: #{tpu_custom_call.1} parent=1 // pred_fallthru
      _
    // Predicated region
    $region14: #{tpu_custom_call.1} parent=1 // pred_check
      _
    $region15: #{tpu_custom_call.1} parent=1 // pred_check_branch
      %17 = sbr.rel (0) target = $region17
    $region16: #{tpu_custom_call.1} parent=1 // pred_region
      _
    $region17: #{tpu_custom_call.1} parent=1 // pred_fallthru
      _
    %v19 = vld [vmem:[%s1] sm:$0xff]
    %v20 = vld [vmem:[%s1 + $0x8] sm:$0xff]
    %v21 = vld [vmem:[%s1 + $0x10] sm:$0xff]
    %v22 = vld [vmem:[%s1 + $0x18] sm:$0xff]
    %v23 = vpack.c.bf16 %v20, %v19
    %v24 = vpack.c.bf16 %v22, %v21
    %v25 = vld [vmem:[%s2] sm:$0xf]
    %v26 = vld [vmem:[%s2 + $0x4] sm:$0xf]
    %v27 = vld [vmem:[%s3] sm:$0x1]
    %v29 = vlaneseq
    %v30 = vshrl.u32 %v29, 7
    %v31 = vsub.s32 0, %v30
    %v32 = vrot.slane %v27, %v31
    %v36 = vunpack.c.l.b16 %v25
    %v37 = vunpack.c.l.b16 %v26
    %v38 = vpack.c.b16 %v37, %v36
    %vm40 = vcmask 130048
    %v42 = vsel %vm40, %v23, 0
    %v45 = vsel %vm40, %v24, 0
    %47 = vmatprep.subr.bf16.mxu0 0
    %48 = vmatpush1.bf16.msra.mxu0 %v38
    %49 = vmatprep.subr.bf16.mxu0 0
    %50 = vmatpush1.bf16.msra.mxu0 0
    %51 = vmatprep.subr.bf16.mxu0 0
    %52 = vmatpush1.bf16.msra.mxu0 0
    %53 = vmatprep.subr.bf16.mxu0 0
    %54 = vmatpush1.bf16.msra.mxu0 0
    %55 = vmatprep.subr.bf16.mxu0 0
    %56 = vmatpush1.bf16.msra.mxu0 0
    %57 = vmatprep.subr.bf16.mxu0 0
    %58 = vmatpush1.bf16.msra.mxu0 0
    %59 = vmatprep.subr.bf16.mxu0 0
    %60 = vmatpush1.bf16.msra.mxu0 0
    %61 = vmatprep.subr.bf16.mxu0 0
    %62 = vmatpush1.bf16.msra.mxu0 0
    %63 = vmatprep.subr.bf16.mxu0 0
    %64 = vmatpush1.bf16.msra.mxu0 0
    %65 = vmatprep.subr.bf16.mxu0 0
    %66 = vmatpush1.bf16.msra.mxu0 0
    %67 = vmatprep.subr.bf16.mxu0 0
    %68 = vmatpush1.bf16.msra.mxu0 0
    %69 = vmatprep.subr.bf16.mxu0 0
    %70 = vmatpush1.bf16.msra.mxu0 0
    %71 = vmatprep.subr.bf16.mxu0 0
    %72 = vmatpush1.bf16.msra.mxu0 0
    %73 = vmatprep.subr.bf16.mxu0 0
    %74 = vmatpush1.bf16.msra.mxu0 0
    %75 = vmatprep.subr.bf16.mxu0 0
    %76 = vmatpush1.bf16.msra.mxu0 0
    %77 = vmatprep.subr.bf16.mxu0 0
    %78 = vmatpush1.bf16.msra.mxu0 0
    %79 = vmatprep.mubr.bf16.mxu0 0
    %80 = vmatmul.mubr.bf16.gmra.mrb[0].mxu0 %v42
    %v81 = vpop.f32.mrb[0].mxu0
    %v82 = vadd.f32 %v32, %v81
    %v83 = vpop.f32.mrb[0].mxu0
    %v84 = vpop.f32.mrb[0].mxu0
    %v85 = vadd.f32 %v32, %v84
    %v86 = vpop.f32.mrb[0].mxu0
    %87 = vmatprep.mubr.bf16.mxu0 0
    %88 = vmatmul.mubr.bf16.gmra.mrb[0].mxu0 %v45
    %v89 = vpop.f32.mrb[0].mxu0
    %v90 = vadd.f32 %v32, %v89
    %v91 = vpop.f32.mrb[0].mxu0
    %v92 = vpop.f32.mrb[0].mxu0
    %v93 = vadd.f32 %v32, %v92
    %v94 = vpop.f32.mrb[0].mxu0
    %95 = vdwg.mxu0
    %v96 = vld [vmem:[%s0] sm:$0xff]
    %v97 = vld [vmem:[%s0 + $0x8] sm:$0xff]
    %v98 = vld [vmem:[%s0 + $0x10] sm:$0xff]
    %v99 = vld [vmem:[%s0 + $0x18] sm:$0xff]
    %100 = vst [vmem:[#allocation2] sm:$0xff] %v96
    %101 = vst [vmem:[#allocation2 + $0x10] sm:$0xff] %v97
    %102 = vst [vmem:[#allocation2 + $0x20] sm:$0xff] %v98
    %103 = vst [vmem:[#allocation2 + $0x30] sm:$0xff] %v99
    %vm104 = vcmask 261120
    %105 = vst.msk [vmem:[#allocation2 + $0x8] sm:$0xff] %vm104, %v82
    %106 = vst.msk [vmem:[#allocation2 + $0x18] sm:$0xff] %vm104, %v85
    %107 = vst.msk [vmem:[#allocation2 + $0x28] sm:$0xff] %vm104, %v90
    %108 = vst.msk [vmem:[#allocation2 + $0x38] sm:$0xff] %vm104, %v93
    // Predicated region
    $region18: #{tpu_custom_call.1} parent=1 // pred_check
      _
    $region19: #{tpu_custom_call.1} parent=1 // pred_check_branch
      %110 = sbr.rel (0) target = $region21
    $region20: #{tpu_custom_call.1} parent=1 // pred_region
      %s112 = ssub.s32 1024, 1024
      %113 = vsyncadd [#allocation3], %s112
      %s114 = sshll.u32 [#allocation2], 4
      %s115 = int_to_ptr.vmem [resolvable:$true] %s114
      %120 = dma.vmem_to_hbm [thread:$0]  %s115, 1024, %s4, [#allocation3], 256, 256, 16
    $region21: #{tpu_custom_call.1} parent=1 // pred_fallthru
      _
    // Predicated region
    $region22: #{tpu_custom_call.1} parent=1 // pred_check
      _
    $region23: #{tpu_custom_call.1} parent=1 // pred_check_branch
      %122 = sbr.rel (0) target = $region25
    $region24: #{tpu_custom_call.1} parent=1 // pred_region
      %123 = dma.done [#allocation3], 1024
    $region25: #{tpu_custom_call.1} parent=1 // pred_fallthru
      _
    %124 = vsyncpa [#allocation3], 1

</llo_original>
